<compile_context>
chip_gen: v7x
topology: tpu7x:2x2x1
jax: 0.10.0
libtpu: 0.0.40
codegen_flags: <defaults>
</compile_context>

<pallas_src>
import math

import jax
import jax.numpy as jnp
from jax import lax
from jax.experimental import pallas as pl
from jax.experimental.pallas import tpu as pltpu


# --------------------------------------------------------------------------- #
# Helpers
# --------------------------------------------------------------------------- #
def _nbytes(shape, dtype):
    return int(math.prod(shape)) * jnp.dtype(dtype).itemsize


def _mosaic_params(dim_sem, pipelined_bytes, resident_bytes=0):
    """Explicit scoped-VMEM budget: pipelined blocks are double-buffered.
    TODO(synk): per-generation tuning (v7x physical VMEM is only 64 MiB)."""
    need = 2 * pipelined_bytes + resident_bytes + (8 << 20)
    limit = int(min(max(need, 32 << 20), 96 << 20))
    return pltpu.CompilerParams(dimension_semantics=dim_sem,
                                vmem_limit_bytes=limit)


# --------------------------------------------------------------------------- #
# Generic linear: y = x @ W^T + b, M-tiled, weight/bias resident in VMEM.
# Operands cast to the weight's dtype (bf16 fast path), f32 accumulation.
# --------------------------------------------------------------------------- #
def _make_linear_kernel(compute_dtype):
    def kernel(x_ref, w_ref, b_ref, o_ref):
        y = jnp.dot(x_ref[...].astype(compute_dtype), w_ref[...],
                    preferred_element_type=jnp.float32)
        o_ref[...] = (y + b_ref[...]).astype(o_ref.dtype)
    return kernel


def pallas_linear(x, w_t, b, *, out_dtype=None, tm=512):
    """x: (M, Din) @ w_t: (Din, Dout) + b: (Dout,) -> (M, Dout)."""
    M, Din = x.shape
    Dout = w_t.shape[1]
    out_dtype = out_dtype or x.dtype
    TM = M if M <= tm else tm
    blk = (_nbytes((TM, Din), x.dtype) + _nbytes((Din, Dout), w_t.dtype)
           + _nbytes((1, Dout), jnp.float32) + _nbytes((TM, Dout), out_dtype))
    return pl.pallas_call(
        _make_linear_kernel(w_t.dtype),
        out_shape=jax.ShapeDtypeStruct((M, Dout), out_dtype),
        grid=(pl.cdiv(M, TM),),
        in_specs=[
            pl.BlockSpec((TM, Din), lambda i: (i, 0)),
            pl.BlockSpec((Din, Dout), lambda i: (0, 0)),   # resident weight
            pl.BlockSpec((1, Dout), lambda i: (0, 0)),     # resident bias
        ],
        out_specs=pl.BlockSpec((TM, Dout), lambda i: (i, 0)),
        compiler_params=_mosaic_params(("parallel",), blk),
    )(x, w_t, b.astype(jnp.float32).reshape(1, Dout))


# --------------------------------------------------------------------------- #
# Fused QKV projection (self-attention): one (D, 3D) matmul, three lane-dense
# (M, D) outputs stored in the attention compute dtype (bf16 on the fast path).
# --------------------------------------------------------------------------- #
def _make_qkv_kernel(D, compute_dtype):
    def kernel(x_ref, w_ref, b_ref, q_ref, k_ref, v_ref):
        y = jnp.dot(x_ref[...].astype(compute_dtype), w_ref[...],
                    preferred_element_type=jnp.float32) + b_ref[...]
        q_ref[...] = y[:, 0 * D:1 * D].astype(q_ref.dtype)
        k_ref[...] = y[:, 1 * D:2 * D].astype(k_ref.dtype)
        v_ref[...] = y[:, 2 * D:3 * D].astype(v_ref.dtype)
    return kernel


def pallas_fused_qkv(x, w_qkv_t, b_qkv, D, *, out_dtype=None, tm=512):
    """x: (M, D), w_qkv_t: (D, 3D), b_qkv: (3D,) -> (q, k, v) each (M, D)."""
    M = x.shape[0]
    out_dtype = out_dtype or x.dtype
    TM = M if M <= tm else tm
    blk = (_nbytes((TM, D), x.dtype) + _nbytes((D, 3 * D), w_qkv_t.dtype)
           + _nbytes((1, 3 * D), jnp.float32) + 3 * _nbytes((TM, D), out_dtype))
    out_sds = jax.ShapeDtypeStruct((M, D), out_dtype)
    return pl.pallas_call(
        _make_qkv_kernel(D, w_qkv_t.dtype),
        out_shape=(out_sds, out_sds, out_sds),
        grid=(pl.cdiv(M, TM),),
        in_specs=[
            pl.BlockSpec((TM, D), lambda i: (i, 0)),
            pl.BlockSpec((D, 3 * D), lambda i: (0, 0)),    # resident weight
            pl.BlockSpec((1, 3 * D), lambda i: (0, 0)),    # resident bias
        ],
        out_specs=tuple(pl.BlockSpec((TM, D), lambda i: (i, 0)) for _ in range(3)),
        compiler_params=_mosaic_params(("parallel",), blk),
    )(x, w_qkv_t, b_qkv.astype(jnp.float32).reshape(1, 3 * D))


# --------------------------------------------------------------------------- #
# Attention path A (scores requested): full-S K/V resident, one grid step per
# (batch, q-tile), ALL heads handled in-kernel. Exact softmax divide so the
# stored attention_scores match the module. q arrives pre-scaled by 1/sqrt(d_k).
# --------------------------------------------------------------------------- #
def _make_attn_scores_kernel(h, d_k):
    def kernel(q_ref, k_ref, v_ref, m_ref, o_ref, s_ref):
        q = q_ref[...]                     # (TQ, D)   already scaled
        k = k_ref[...]                     # (S,  D)
        v = v_ref[...]                     # (S,  D)
        # additive mask bias: computed once, shared by all heads (add, not select)
        bias = jnp.where(m_ref[...] == 0, jnp.float32(-1e9), jnp.float32(0.0))
        for hh in range(h):                # static unrolled head loop
            sl = slice(hh * d_k, (hh + 1) * d_k)
            s = lax.dot_general(q[:, sl], k[:, sl],
                                dimension_numbers=(((1,), (1,)), ((), ())),
                                preferred_element_type=jnp.float32) + bias
            s = s - jnp.max(s, axis=-1, keepdims=True)
            e = jnp.exp(s)
            p = e / jnp.sum(e, axis=-1, keepdims=True)   # exact (scores exposed)
            # dropout: identity (p = 0.0 / eval mode)
            s_ref[hh] = p.astype(s_ref.dtype)
            o_ref[:, sl] = jnp.dot(p.astype(v.dtype), v[:, sl],
                                   preferred_element_type=jnp.float32
                                   ).astype(o_ref.dtype)
    return kernel


def pallas_attention_scores(q, k, v, mask, h, *, tq=256):
    B, S, D = q.shape
    d_k = D // h
    TQ = S if S <= tq else tq
    blk = (2 * _nbytes((TQ, D), q.dtype) + 2 * _nbytes((S, D), k.dtype)
           + _nbytes((TQ, S), mask.dtype) + _nbytes((h, TQ, S), jnp.float32))
    return pl.pallas_call(
        _make_attn_scores_kernel(h, d_k),
        out_shape=(jax.ShapeDtypeStruct((B, S, D), q.dtype),
                   jax.ShapeDtypeStruct((B, h, S, S), jnp.float32)),
        grid=(B, pl.cdiv(S, TQ)),
        in_specs=[
            pl.BlockSpec((None, TQ, D), lambda b, t: (b, t, 0)),
            pl.BlockSpec((None, S, D), lambda b, t: (b, 0, 0)),      # resident
            pl.BlockSpec((None, S, D), lambda b, t: (b, 0, 0)),      # resident
            pl.BlockSpec((None, None, TQ, S), lambda b, t: (b, 0, t, 0)),
        ],
        out_specs=(pl.BlockSpec((None, TQ, D), lambda b, t: (b, t, 0)),
                   pl.BlockSpec((None, h, TQ, S), lambda b, t: (b, 0, t, 0))),
        # batch axis megacore-sharded; q-tile axis sequential (K/V residency)
        compiler_params=_mosaic_params(("parallel", "arbitrary"), blk),
    )(q, k, v, mask)


# --------------------------------------------------------------------------- #
# Attention path B (default, no scores): KV-tiled online softmax (flash).
# grid = (B, q-tiles, kv-tiles); m/l/acc scratch persists across kv steps with
# pl.when init/finalize. Bounds K/V VMEM residency for long sequences.
# --------------------------------------------------------------------------- #
def _make_attn_flash_kernel(h, d_k):
    def kernel(q_ref, k_ref, v_ref, m_ref, o_ref, m_sc, l_sc, acc_sc):
        kv = pl.program_id(2)

        @pl.when(kv == 0)
        def _():
            m_sc[...] = jnp.full_like(m_sc, -jnp.inf)
            l_sc[...] = jnp.zeros_like(l_sc)
            acc_sc[...] = jnp.zeros_like(acc_sc)

        q = q_ref[...]                     # (TQ, D)   already scaled
        k = k_ref[...]                     # (TK, D)
        v = v_ref[...]                     # (TK, D)
        bias = jnp.where(m_ref[...] == 0, jnp.float32(-1e9), jnp.float32(0.0))

        for hh in range(h):                # static unrolled head loop
            sl = slice(hh * d_k, (hh + 1) * d_k)
            s = lax.dot_general(q[:, sl], k[:, sl],
                                dimension_numbers=(((1,), (1,)), ((), ())),
                                preferred_element_type=jnp.float32) + bias
            m_prev = m_sc[hh]                                     # (TQ, 1)
            m_new = jnp.maximum(m_prev, jnp.max(s, axis=-1, keepdims=True))
            alpha = jnp.exp(m_prev - m_new)
            p = jnp.exp(s - m_new)
            l_sc[hh] = alpha * l_sc[hh] + jnp.sum(p, axis=-1, keepdims=True)
            acc_sc[hh] = alpha * acc_sc[hh] + jnp.dot(
                p.astype(v.dtype), v[:, sl], preferred_element_type=jnp.float32)
            m_sc[hh] = m_new

        @pl.when(kv == pl.num_programs(2) - 1)
        def _():
            for hh in range(h):
                sl = slice(hh * d_k, (hh + 1) * d_k)
                o_ref[:, sl] = (acc_sc[hh] *
                                pl.reciprocal(l_sc[hh], approx=True)
                                ).astype(o_ref.dtype)
    return kernel


def pallas_attention_flash(q, k, v, mask, h, *, tq=256, tk=512):
    B, S, D = q.shape
    d_k = D // h
    TQ = S if S <= tq else tq
    TK = S if S <= tk else tk
    blk = (2 * _nbytes((TQ, D), q.dtype) + 2 * _nbytes((TK, D), k.dtype)
           + _nbytes((TQ, TK), mask.dtype))
    scratch = _nbytes((h, TQ, d_k + 2), jnp.float32)
    return pl.pallas_call(
        _make_attn_flash_kernel(h, d_k),
        out_shape=jax.ShapeDtypeStruct((B, S, D), q.dtype),
        grid=(B, pl.cdiv(S, TQ), pl.cdiv(S, TK)),
        in_specs=[
            pl.BlockSpec((None, TQ, D), lambda b, qt, kt: (b, qt, 0)),
            pl.BlockSpec((None, TK, D), lambda b, qt, kt: (b, kt, 0)),
            pl.BlockSpec((None, TK, D), lambda b, qt, kt: (b, kt, 0)),
            pl.BlockSpec((None, None, TQ, TK), lambda b, qt, kt: (b, 0, qt, kt)),
        ],
        out_specs=pl.BlockSpec((None, TQ, D), lambda b, qt, kt: (b, qt, 0)),
        scratch_shapes=[pltpu.VMEM((h, TQ, 1), jnp.float32),     # running max
                        pltpu.VMEM((h, TQ, 1), jnp.float32),     # running sum
                        pltpu.VMEM((h, TQ, d_k), jnp.float32)],  # accumulator
        compiler_params=_mosaic_params(("parallel", "arbitrary", "arbitrary"),
                                       blk, scratch),
    )(q, k, v, mask)


# --------------------------------------------------------------------------- #
# One-time parameter preparation (hoisted out of the forward pass):
# transpose, fold 1/sqrt(d_k) into W_q/b_q (mathematically identical), build the
# fused (D, 3D) QKV weight, cast weights to the matmul compute dtype.
# --------------------------------------------------------------------------- #
def prepare_params(params, h, compute_dtype=jnp.bfloat16):
    D = params["w_q"].shape[0]
    scale = 1.0 / math.sqrt(D // h)
    w_q_t = params["w_q"].T * scale
    b_q = params["b_q"] * scale
    w_k_t, b_k = params["w_k"].T, params["b_k"]
    w_v_t, b_v = params["w_v"].T, params["b_v"]
    cd = compute_dtype
    return dict(
        w_q_t=w_q_t.astype(cd), b_q=b_q.astype(jnp.float32),
        w_k_t=w_k_t.astype(cd), b_k=b_k.astype(jnp.float32),
        w_v_t=w_v_t.astype(cd), b_v=b_v.astype(jnp.float32),
        w_o_t=params["w_o"].T.astype(cd), b_o=params["b_o"].astype(jnp.float32),
        w_qkv_t=jnp.concatenate([w_q_t, w_k_t, w_v_t], axis=1).astype(cd),
        b_qkv=jnp.concatenate([b_q, b_k, b_v]).astype(jnp.float32),
    )


# --------------------------------------------------------------------------- #
# Full MultiHeadAttentionBlock.forward
# --------------------------------------------------------------------------- #
def multi_head_attention_block(q, k, v, mask, prep, h, *, return_scores=False):
    B, S, D = q.shape
    cd = prep["w_qkv_t"].dtype

    if q is k and k is v:
        # self-attention: single pass over x with the fused (D, 3D) weight
        qp, kp, vp = pallas_fused_qkv(q.reshape(B * S, D), prep["w_qkv_t"],
                                      prep["b_qkv"], D, out_dtype=cd)
    else:
        qp = pallas_linear(q.reshape(B * S, D), prep["w_q_t"], prep["b_q"], out_dtype=cd)
        kp = pallas_linear(k.reshape(B * S, D), prep["w_k_t"], prep["b_k"], out_dtype=cd)
        vp = pallas_linear(v.reshape(B * S, D), prep["w_v_t"], prep["b_v"], out_dtype=cd)

    # pure metadata reshapes (no HBM transpose anywhere)
    qp = qp.reshape(B, S, D)
    kp = kp.reshape(B, S, D)
    vp = vp.reshape(B, S, D)

    if return_scores:
        x, scores = pallas_attention_scores(qp, kp, vp, mask, h)
    else:
        x = pallas_attention_flash(qp, kp, vp, mask, h)
        scores = None

    out = pallas_linear(x.reshape(B * S, D), prep["w_o_t"], prep["b_o"],
                        out_dtype=q.dtype).reshape(B, S, D)
    return (out, scores) if return_scores else out


# --------------------------------------------------------------------------- #
# Pure-JAX reference (mirrors the PyTorch forward exactly)
# --------------------------------------------------------------------------- #
def reference_forward(q, k, v, mask, params, h):
    B, S, D = q.shape
    d_k = D // h

    def lin(x, w, b):
        return x @ w.T + b

    Q = lin(q, params["w_q"], params["b_q"]).reshape(B, S, h, d_k).transpose(0, 2, 1, 3)
    K = lin(k, params["w_k"], params["b_k"]).reshape(B, S, h, d_k).transpose(0, 2, 1, 3)
    V = lin(v, params["w_v"], params["b_v"]).reshape(B, S, h, d_k).transpose(0, 2, 1, 3)

    scores = (Q @ K.transpose(0, 1, 3, 2)) / math.sqrt(d_k)
    scores = jnp.where(mask == 0, jnp.float32(-1e9), scores)
    scores = jax.nn.softmax(scores, axis=-1)
    x = (scores @ V).transpose(0, 2, 1, 3).reshape(B, S, D)
    return lin(x, params["w_o"], params["b_o"]), scores


if __name__ == "__main__":
    # Small shapes: batch=2, seq=8, d_model=32, heads=4 (d_k=8), dropout=0.0
    B, S, D, H = 2, 8, 32, 4
    key = jax.random.PRNGKey(0)
    ks = jax.random.split(key, 12)

    def init_linear(kw, kb, d_out, d_in):
        bound = 1.0 / math.sqrt(d_in)
        w = jax.random.uniform(kw, (d_out, d_in), jnp.float32, -bound, bound)
        b = jax.random.uniform(kb, (d_out,), jnp.float32, -bound, bound)
        return w, b

    w_q, b_q = init_linear(ks[0], ks[1], D, D)
    w_k, b_k = init_linear(ks[2], ks[3], D, D)
    w_v, b_v = init_linear(ks[4], ks[5], D, D)
    w_o, b_o = init_linear(ks[6], ks[7], D, D)
    params = dict(w_q=w_q, b_q=b_q, w_k=w_k, b_k=b_k,
                  w_v=w_v, b_v=b_v, w_o=w_o, b_o=b_o)

    x_self = jax.random.normal(ks[8], (B, S, D), jnp.float32)
    q_in = jax.random.normal(ks[9], (B, S, D), jnp.float32)
    k_in = jax.random.normal(ks[10], (B, S, D), jnp.float32)
    v_in = jax.random.normal(ks[11], (B, S, D), jnp.float32)
    # causal mask, broadcast over heads: (B, 1, S, S), 0 -> masked
    mask = jnp.broadcast_to(
        jnp.tril(jnp.ones((S, S), jnp.int32))[None, None], (B, 1, S, S))

    ref_self, ref_sc = reference_forward(x_self, x_self, x_self, mask, params, H)
    ref_cross, _ = reference_forward(q_in, k_in, v_in, mask, params, H)

    # ---- exact path (f32 operands): self-attn w/ scores + cross-attn flash ----
    prep32 = prepare_params(params, H, compute_dtype=jnp.float32)
    out1, sc1 = multi_head_attention_block(x_self, x_self, x_self, mask,
                                           prep32, H, return_scores=True)
    out1 = jax.block_until_ready(out1)
    sc1 = jax.block_until_ready(sc1)
    assert out1.shape == (B, S, D) and sc1.shape == (B, H, S, S)
    assert jnp.allclose(out1, ref_self, rtol=2e-3, atol=2e-3), "f32 self-attn mismatch"
    assert jnp.allclose(sc1, ref_sc, rtol=2e-3, atol=2e-3), "f32 scores mismatch"

    out2 = jax.block_until_ready(
        multi_head_attention_block(q_in, k_in, v_in, mask, prep32, H))
    assert out2.shape == (B, S, D)
    assert jnp.allclose(out2, ref_cross, rtol=3e-3, atol=3e-3), "f32 flash mismatch"

    # ---- fast path (bf16 operands, f32 accumulation): looser tolerance ----
    prep16 = prepare_params(params, H, compute_dtype=jnp.bfloat16)
    out3, sc3 = multi_head_attention_block(x_self, x_self, x_self, mask,
                                           prep16, H, return_scores=True)
    out3 = jax.block_until_ready(out3)
    sc3 = jax.block_until_ready(sc3)
    assert jnp.allclose(out3, ref_self, rtol=5e-2, atol=5e-2), "bf16 self-attn mismatch"
    assert jnp.allclose(sc3, ref_sc, rtol=5e-2, atol=5e-2), "bf16 scores mismatch"

    out4 = jax.block_until_ready(
        multi_head_attention_block(q_in, k_in, v_in, mask, prep16, H))
    assert jnp.allclose(out4, ref_cross, rtol=5e-2, atol=5e-2), "bf16 flash mismatch"

    print("KERNEL_OK")
</pallas_src>

<mosaic_0001>
module attributes {stable_mosaic.version = 11 : i64} {
  func.func @kernel(%arg0: i32, %arg1: memref<16x32xf32, #tpu.memory_space<vmem>>, %arg2: memref<32x96xf32, #tpu.memory_space<vmem>>, %arg3: memref<1x96xf32, #tpu.memory_space<vmem>>, %arg4: memref<16x32xf32, #tpu.memory_space<vmem>>, %arg5: memref<16x32xf32, #tpu.memory_space<vmem>>, %arg6: memref<16x32xf32, #tpu.memory_space<vmem>>) attributes {dimension_semantics = [#tpu.dimension_semantics<parallel>], iteration_bounds = array<i64: 1>, scalar_prefetch = 0 : i64, scratch_operands = 0 : i64, tpu.core_type = #tpu.core_type<tc>, window_params = [{transform_indices = @transform_0, window_bounds = array<i64: 16, 32>}, {pipeline_mode = #tpu.pipeline_mode<synchronous>, transform_indices = @transform_1, window_bounds = array<i64: 32, 96>}, {pipeline_mode = #tpu.pipeline_mode<synchronous>, transform_indices = @transform_2, window_bounds = array<i64: 1, 96>}, {transform_indices = @transform_3, window_bounds = array<i64: 16, 32>}, {transform_indices = @transform_4, window_bounds = array<i64: 16, 32>}, {transform_indices = @transform_5, window_bounds = array<i64: 16, 32>}]} {
    %c0 = arith.constant 0 : index
    %c0_0 = arith.constant 0 : index
    %0 = vector.load %arg1[%c0, %c0_0] : memref<16x32xf32, #tpu.memory_space<vmem>>, vector<16x32xf32>
    %c0_1 = arith.constant 0 : index
    %c0_2 = arith.constant 0 : index
    %1 = vector.load %arg2[%c0_1, %c0_2] : memref<32x96xf32, #tpu.memory_space<vmem>>, vector<32x96xf32>
    %cst = arith.constant dense<0.000000e+00> : vector<16x96xf32>
    %2 = tpu.matmul %0, %1, %cst {dimension_numbers = #tpu.dot_dimension_numbers<[1], [0], [0], [1], [0, 0, 1, 1], [], []>} : vector<16x32xf32>, vector<32x96xf32>, vector<16x96xf32> -> vector<16x96xf32>
    %c0_3 = arith.constant 0 : index
    %c0_4 = arith.constant 0 : index
    %3 = vector.load %arg3[%c0_3, %c0_4] : memref<1x96xf32, #tpu.memory_space<vmem>>, vector<1x96xf32>
    %4 = vector.broadcast %3 : vector<1x96xf32> to vector<16x96xf32>
    %5 = arith.addf %2, %4 : vector<16x96xf32>
    %6 = vector.extract_strided_slice %5 {offsets = [0, 0], sizes = [16, 32], strides = [1, 1]} : vector<16x96xf32> to vector<16x32xf32>
    %c0_5 = arith.constant 0 : index
    %c0_6 = arith.constant 0 : index
    %7 = vector.load %arg4[%c0_5, %c0_6] : memref<16x32xf32, #tpu.memory_space<vmem>>, vector<16x32xf32>
    tpu.vector_store %arg4[%c0_5, %c0_6], %6 {strides = array<i32>} : memref<16x32xf32, #tpu.memory_space<vmem>>, vector<16x32xf32>,
    %8 = vector.extract_strided_slice %5 {offsets = [0, 32], sizes = [16, 32], strides = [1, 1]} : vector<16x96xf32> to vector<16x32xf32>
    %c0_7 = arith.constant 0 : index
    %c0_8 = arith.constant 0 : index
    %9 = vector.load %arg5[%c0_7, %c0_8] : memref<16x32xf32, #tpu.memory_space<vmem>>, vector<16x32xf32>
    tpu.vector_store %arg5[%c0_7, %c0_8], %8 {strides = array<i32>} : memref<16x32xf32, #tpu.memory_space<vmem>>, vector<16x32xf32>,
    %10 = vector.extract_strided_slice %5 {offsets = [0, 64], sizes = [16, 32], strides = [1, 1]} : vector<16x96xf32> to vector<16x32xf32>
    %c0_9 = arith.constant 0 : index
    %c0_10 = arith.constant 0 : index
    %11 = vector.load %arg6[%c0_9, %c0_10] : memref<16x32xf32, #tpu.memory_space<vmem>>, vector<16x32xf32>
    tpu.vector_store %arg6[%c0_9, %c0_10], %10 {strides = array<i32>} : memref<16x32xf32, #tpu.memory_space<vmem>>, vector<16x32xf32>,
    return
  }
  func.func @transform_0(%arg0: i32) -> (i32, i32) {
    %c0_i32 = arith.constant 0 : i32
    %c0_i32_0 = arith.constant 0 : i32
    return %arg0, %c0_i32 : i32, i32
  }
  func.func @transform_1(%arg0: i32) -> (i32, i32) {
    %c0_i32 = arith.constant 0 : i32
    %c0_i32_0 = arith.constant 0 : i32
    %c0_i32_1 = arith.constant 0 : i32
    return %c0_i32, %c0_i32_0 : i32, i32
  }
  func.func @transform_2(%arg0: i32) -> (i32, i32) {
    %c0_i32 = arith.constant 0 : i32
    %c0_i32_0 = arith.constant 0 : i32
    %c0_i32_1 = arith.constant 0 : i32
    return %c0_i32, %c0_i32_0 : i32, i32
  }
  func.func @transform_3(%arg0: i32) -> (i32, i32) {
    %c0_i32 = arith.constant 0 : i32
    %c0_i32_0 = arith.constant 0 : i32
    return %arg0, %c0_i32 : i32, i32
  }
  func.func @transform_4(%arg0: i32) -> (i32, i32) {
    %c0_i32 = arith.constant 0 : i32
    %c0_i32_0 = arith.constant 0 : i32
    return %arg0, %c0_i32 : i32, i32
  }
  func.func @transform_5(%arg0: i32) -> (i32, i32) {
    %c0_i32 = arith.constant 0 : i32
    %c0_i32_0 = arith.constant 0 : i32
    return %arg0, %c0_i32 : i32, i32
  }
}

</mosaic_0001>

<llo_original>
// kernel: tpu_custom_call.1
$region0: #{tpu_custom_call.1}
  #allocation0 [shape = 'u32[]', space=smem, size = 0x4, offset = 0x4, fixed_abs, tag = 'smem constant byte address 0x4 - core index']
  #allocation1 [shape = 'u32[144,128]{1,0:T(1,128)}', space=vmem, size = 0x12000, scoped, tag = 'internal scratch']
  %s0 = inlined_call_operand.hbm [shape: f32[16,32], index: 0, kind: input, shape index: {}]
  %s1 = inlined_call_operand.hbm [shape: f32[32,96], index: 1, kind: input, shape index: {}]
  %s2 = inlined_call_operand.vmem [shape: f32[1,96], index: 2, kind: input, shape index: {}]
  %s3 = inlined_call_operand.hbm [shape: f32[16,32], index: 3, kind: output, shape index: {0}]
  %s4 = inlined_call_operand.hbm [shape: f32[16,32], index: 4, kind: output, shape index: {1}]
  %s5 = inlined_call_operand.hbm [shape: f32[16,32], index: 5, kind: output, shape index: {2}]
  %6 = xla_tuple %s3, %s4, %s5
  %s7 = sld [smem:[#allocation0]]
  $region46: #{tpu_custom_call.1} parent=0
    _
  %s9 = ssub.s32 1, %s7
  %s10 = scalar_select 0, %s9, %s7
  $region1: #{tpu_custom_call.1} parent=0
    #allocation2 [shape = 'u8[8192]{0}', space=vmem, size = 0x2000, scoped, tag = 'input window, operand 0, single buffered']
    #allocation3 [shape = 's32[1]{0}', space=sflag, size = 0x4, scoped, tag = 'scoped memory for tpu_custom_call.1']
    #allocation4 [shape = 's32[1]{0}', space=sflag, size = 0x4, scoped, tag = 'scoped memory for tpu_custom_call.1']
    #allocation5 [shape = 'u8[16384]{0}', space=vmem, size = 0x4000, scoped, tag = 'input window, operand 1, single buffered']
    #allocation6 [shape = 's32[1]{0}', space=sflag, size = 0x4, scoped, tag = 'scoped memory for tpu_custom_call.1']
    #allocation7 [shape = 'u8[8192]{0}', space=vmem, size = 0x2000, scoped, tag = 'output window, operand 0, single buffered']
    #allocation8 [shape = 'u8[8192]{0}', space=vmem, size = 0x2000, scoped, tag = 'output window, operand 1, single buffered']
    #allocation9 [shape = 's32[1]{0}', space=sflag, size = 0x4, scoped, tag = 'scoped memory for tpu_custom_call.1']
    #allocation10 [shape = 'u8[8192]{0}', space=vmem, size = 0x2000, scoped, tag = 'output window, operand 2, single buffered']
    %11 = vsyncpa [#allocation3], 0
    %12 = vsyncpa [#allocation6], 0
    %13 = vsyncpa [#allocation4], 0
    %14 = vsyncpa [#allocation9], 0
    // Predicated region
    $region2: #{tpu_custom_call.1} parent=1 // pred_check
      _
    $region3: #{tpu_custom_call.1} parent=1 // pred_check_branch
      %16 = sbr.rel (0) target = $region5
    $region4: #{tpu_custom_call.1} parent=1 // pred_region
      %s18 = ssub.s32 256, 256
      %19 = vsyncadd [#allocation3], %s18
      %s20 = sshll.u32 [#allocation2], 4
      %s21 = int_to_ptr.vmem [resolvable:$true] %s20
      %26 = dma.hbm_to_vmem [thread:$0]  %s0, 256, %s21, [#allocation3], 128, 128, 8
    $region5: #{tpu_custom_call.1} parent=1 // pred_fallthru
      _
    // Predicated region
    $region6: #{tpu_custom_call.1} parent=1 // pred_check
      _
    $region7: #{tpu_custom_call.1} parent=1 // pred_check_branch
      %28 = sbr.rel (0) target = $region9
    $region8: #{tpu_custom_call.1} parent=1 // pred_region
      %s30 = ssub.s32 512, 512
      %31 = vsyncadd [#allocation6], %s30
      %s32 = sshll.u32 [#allocation5], 4
      %s33 = int_to_ptr.vmem [resolvable:$true] %s32
      %38 = dma.hbm_to_vmem [thread:$0]  %s1, 512, %s33, [#allocation6], 128, 128, 8
    $region9: #{tpu_custom_call.1} parent=1 // pred_fallthru
      _
    // Predicated region
    $region10: #{tpu_custom_call.1} parent=1 // pred_check
      _
    $region11: #{tpu_custom_call.1} parent=1 // pred_check_branch
      %40 = sbr.rel (0) target = $region13
    $region12: #{tpu_custom_call.1} parent=1 // pred_region
      _
    $region13: #{tpu_custom_call.1} parent=1 // pred_fallthru
      _
    // Predicated region
    $region14: #{tpu_custom_call.1} parent=1 // pred_check
      _
    $region15: #{tpu_custom_call.1} parent=1 // pred_check_branch
      %42 = sbr.rel (0) target = $region17
    $region16: #{tpu_custom_call.1} parent=1 // pred_region
      %43 = dma.done [#allocation3], 256
    $region17: #{tpu_custom_call.1} parent=1 // pred_fallthru
      _
    // Predicated region
    $region18: #{tpu_custom_call.1} parent=1 // pred_check
      _
    $region19: #{tpu_custom_call.1} parent=1 // pred_check_branch
      %45 = sbr.rel (0) target = $region21
    $region20: #{tpu_custom_call.1} parent=1 // pred_region
      %46 = dma.done [#allocation6], 512
    $region21: #{tpu_custom_call.1} parent=1 // pred_fallthru
      _
    %v47 = vld [vmem:[#allocation2] sm:$0xff]
    %v48 = vld [vmem:[#allocation2 + $0x8] sm:$0xff]
    %v49 = vld [vmem:[#allocation5] sm:$0xff]
    %v50 = vld [vmem:[#allocation5 + $0x8] sm:$0xff]
    %v51 = vld [vmem:[#allocation5 + $0x10] sm:$0xff]
    %v52 = vld [vmem:[#allocation5 + $0x18] sm:$0xff]
    %v53 = vld [vmem:[%s2] sm:$0x1]
    %v55 = vlaneseq
    %v56 = vshrl.u32 %v55, 7
    %v57 = vsub.s32 0, %v56
    %v58 = vrot.slane %v53, %v57
    %vm60 = vcmask 261120
    %v62 = vsel %vm60, %v47, 0
    %v65 = vsel %vm60, %v48, 0
    %67 = vmatprep.subr.mxu0 0.0
    %68 = vmatpush1.msra.mxu0 %v49
    %69 = vmatprep.subr.mxu0 0.0
    %70 = vmatpush1.msra.mxu0 %v50
    %71 = vmatprep.subr.mxu0 0.0
    %72 = vmatpush1.msra.mxu0 %v51
    %73 = vmatprep.subr.mxu0 0.0
    %74 = vmatpush1.msra.mxu0 %v52
    %75 = vmatprep.subr.mxu0 0.0
    %76 = vmatpush1.msra.mxu0 0.0
    %77 = vmatprep.subr.mxu0 0.0
    %78 = vmatpush1.msra.mxu0 0.0
    %79 = vmatprep.subr.mxu0 0.0
    %80 = vmatpush1.msra.mxu0 0.0
    %81 = vmatprep.subr.mxu0 0.0
    %82 = vmatpush1.msra.mxu0 0.0
    %83 = vmatprep.subr.mxu0 0.0
    %84 = vmatpush1.msra.mxu0 0.0
    %85 = vmatprep.subr.mxu0 0.0
    %86 = vmatpush1.msra.mxu0 0.0
    %87 = vmatprep.subr.mxu0 0.0
    %88 = vmatpush1.msra.mxu0 0.0
    %89 = vmatprep.subr.mxu0 0.0
    %90 = vmatpush1.msra.mxu0 0.0
    %91 = vmatprep.subr.mxu0 0.0
    %92 = vmatpush1.msra.mxu0 0.0
    %93 = vmatprep.subr.mxu0 0.0
    %94 = vmatpush1.msra.mxu0 0.0
    %95 = vmatprep.subr.mxu0 0.0
    %96 = vmatpush1.msra.mxu0 0.0
    %97 = vmatprep.subr.mxu0 0.0
    %98 = vmatpush1.msra.mxu0 0.0
    %99 = vmatprep.subr.mxu0 0.0
    %100 = vmatpush1.msra.mxu0 0.0
    %101 = vmatprep.subr.mxu0 0.0
    %102 = vmatpush1.msra.mxu0 0.0
    %103 = vmatprep.subr.mxu0 0.0
    %104 = vmatpush1.msra.mxu0 0.0
    %105 = vmatprep.subr.mxu0 0.0
    %106 = vmatpush1.msra.mxu0 0.0
    %107 = vmatprep.subr.mxu0 0.0
    %108 = vmatpush1.msra.mxu0 0.0
    %109 = vmatprep.subr.mxu0 0.0
    %110 = vmatpush1.msra.mxu0 0.0
    %111 = vmatprep.subr.mxu0 0.0
    %112 = vmatpush1.msra.mxu0 0.0
    %113 = vmatprep.subr.mxu0 0.0
    %114 = vmatpush1.msra.mxu0 0.0
    %115 = vmatprep.subr.mxu0 0.0
    %116 = vmatpush1.msra.mxu0 0.0
    %117 = vmatprep.subr.mxu0 0.0
    %118 = vmatpush1.msra.mxu0 0.0
    %119 = vmatprep.subr.mxu0 0.0
    %120 = vmatpush1.msra.mxu0 0.0
    %121 = vmatprep.subr.mxu0 0.0
    %122 = vmatpush1.msra.mxu0 0.0
    %123 = vmatprep.subr.mxu0 0.0
    %124 = vmatpush1.msra.mxu0 0.0
    %125 = vmatprep.subr.mxu0 0.0
    %126 = vmatpush1.msra.mxu0 0.0
    %127 = vmatprep.subr.mxu0 0.0
    %128 = vmatpush1.msra.mxu0 0.0
    %129 = vmatprep.subr.mxu0 0.0
    %130 = vmatpush1.msra.mxu0 0.0
    %131 = vmatprep.mubr.f32.mxu0 0.0
    %132 = vmatmul.mubr.f32.gmra.mrb[0].mxu0 %v62
    %v133 = vpop.f32.mrb[0].mxu0
    %v134 = vadd.f32 %v58, %v133
    %v135 = vpop.f32.mrb[0].mxu0
    %136 = vmatprep.mubr.f32.mxu0 0.0
    %137 = vmatmul.mubr.f32.gmra.mrb[0].mxu0 %v65
    %v138 = vpop.f32.mrb[0].mxu0
    %v139 = vadd.f32 %v58, %v138
    %v140 = vpop.f32.mrb[0].mxu0
    %141 = vdwg.mxu0
    %142 = vst.msk [vmem:[#allocation7] sm:$0xff] %vm60, %v134
    %143 = vst.msk [vmem:[#allocation7 + $0x8] sm:$0xff] %vm60, %v139
    %146 = vrot.lane.b32.xlu0 %v134, 96
    %v147 = vpop.permute.xlu0 %146
    %148 = vrot.lane.b32.xlu0 %v139, 96
    %v149 = vpop.permute.xlu0 %148
    %152 = vst.msk [vmem:[#allocation8] sm:$0xff] %vm60, %v147
    %153 = vst.msk [vmem:[#allocation8 + $0x8] sm:$0xff] %vm60, %v149
    %154 = vrot.lane.b32.xlu0 %v134, 64
    %v155 = vpop.permute.xlu0 %154
    %156 = vrot.lane.b32.xlu0 %v139, 64
    %v157 = vpop.permute.xlu0 %156
    %160 = vst.msk [vmem:[#allocation10] sm:$0xff] %vm60, %v155
    %161 = vst.msk [vmem:[#allocation10 + $0x8] sm:$0xff] %vm60, %v157
    // Predicated region
    $region22: #{tpu_custom_call.1} parent=1 // pred_check
      _
    $region23: #{tpu_custom_call.1} parent=1 // pred_check_branch
      %163 = sbr.rel (0) target = $region25
    $region24: #{tpu_custom_call.1} parent=1 // pred_region
      %s165 = ssub.s32 256, 256
      %166 = vsyncadd [#allocation4], %s165
      %s167 = sshll.u32 [#allocation7], 4
      %s168 = int_to_ptr.vmem [resolvable:$true] %s167
      %173 = dma.vmem_to_hbm [thread:$0]  %s168, 256, %s3, [#allocation4], 128, 128, 8
    $region25: #{tpu_custom_call.1} parent=1 // pred_fallthru
      _
    // Predicated region
    $region26: #{tpu_custom_call.1} parent=1 // pred_check
      _
    $region27: #{tpu_custom_call.1} parent=1 // pred_check_branch
      %175 = sbr.rel (0) target = $region29
    $region28: #{tpu_custom_call.1} parent=1 // pred_region
      %s177 = ssub.s32 256, 256
      %178 = vsyncadd [#allocation9], %s177
      %s179 = sshll.u32 [#allocation8], 4
      %s180 = int_to_ptr.vmem [resolvable:$true] %s179
      %185 = dma.vmem_to_hbm [thread:$0]  %s180, 256, %s4, [#allocation9], 128, 128, 8
    $region29: #{tpu_custom_call.1} parent=1 // pred_fallthru
      _
    // Predicated region
    $region30: #{tpu_custom_call.1} parent=1 // pred_check
      _
    $region31: #{tpu_custom_call.1} parent=1 // pred_check_branch
      %187 = sbr.rel (0) target = $region33
    $region32: #{tpu_custom_call.1} parent=1 // pred_region
      %s189 = ssub.s32 256, 256
      %190 = vsyncadd [#allocation9], %s189
      %s191 = sshll.u32 [#allocation10], 4
      %s192 = int_to_ptr.vmem [resolvable:$true] %s191
      %197 = dma.vmem_to_hbm [thread:$0]  %s192, 256, %s5, [#allocation9], 128, 128, 8
    $region33: #{tpu_custom_call.1} parent=1 // pred_fallthru
      _
    // Predicated region
    $region34: #{tpu_custom_call.1} parent=1 // pred_check
      _
    $region35: #{tpu_custom_call.1} parent=1 // pred_check_branch
      %199 = sbr.rel (0) target = $region37
    $region36: #{tpu_custom_call.1} parent=1 // pred_region
      %200 = dma.done [#allocation4], 256
    $region37: #{tpu_custom_call.1} parent=1 // pred_fallthru
      _
    // Predicated region
    $region38: #{tpu_custom_call.1} parent=1 // pred_check
      _
    $region39: #{tpu_custom_call.1} parent=1 // pred_check_branch
      %202 = sbr.rel (0) target = $region41
    $region40: #{tpu_custom_call.1} parent=1 // pred_region
      %203 = dma.done [#allocation9], 256
    $region41: #{tpu_custom_call.1} parent=1 // pred_fallthru
      _
    // Predicated region
    $region42: #{tpu_custom_call.1} parent=1 // pred_check
      _
    $region43: #{tpu_custom_call.1} parent=1 // pred_check_branch
      %205 = sbr.rel (0) target = $region45
    $region44: #{tpu_custom_call.1} parent=1 // pred_region
      %206 = dma.done [#allocation9], 256
    $region45: #{tpu_custom_call.1} parent=1 // pred_fallthru
      _
    %207 = vsyncpa [#allocation3], 1
    %208 = vsyncpa [#allocation6], 1
    %209 = vsyncpa [#allocation4], 1
    %210 = vsyncpa [#allocation9], 1

</llo_original>
